<compile_context>
chip_gen: v7x
topology: tpu7x:2x2x1
jax: 0.10.0
libtpu: 0.0.40
codegen_flags: <defaults>
</compile_context>

<pallas_src>
import functools

import jax
import jax.numpy as jnp
from jax.experimental import pallas as pl
from jax.experimental.pallas import tpu as pltpu


def cca_kernel(x_ref, w1t_ref, b1_ref, w2t_ref, b2_ref, o_ref, *, inv_hw):
    # x block: (Nb, C, HW) f32.
    x = x_ref[...]                                      # (Nb, C, HW)

    # One-pass statistics: sum and sum-of-squares in a single sweep over x.
    s = jnp.sum(x, axis=-1)                             # (Nb, C)
    sq = jnp.sum(x * x, axis=-1)                        # (Nb, C)
    mean = s * inv_hw
    var = jnp.maximum(sq * inv_hw - mean * mean, 0.0)   # clamp round-off negatives
    contrast = mean + jnp.sqrt(var)                     # (Nb, C)  == pool + stdv

    # 1x1 conv (C -> Cr) + ReLU + 1x1 conv (Cr -> C) on the contrast vector.
    h = jnp.dot(contrast, w1t_ref[...],
                preferred_element_type=jnp.float32) + b1_ref[...]   # (Nb, Cr)
    h = jnp.maximum(h, 0.0)
    y = jnp.dot(h, w2t_ref[...],
                preferred_element_type=jnp.float32) + b2_ref[...]   # (Nb, C)
    gate = jax.nn.sigmoid(y)                            # (Nb, C)

    # x * sigmoid(conv(contrast(x))): broadcast the per-channel gate over lanes.
    o_ref[...] = (x * gate[:, :, None]).astype(o_ref.dtype)


def _pick_batch_block(n, per_image_bytes, target_bytes=2 << 20):
    """Largest divisor Nb of n with Nb*per_image <= target, keeping grid >= 2 if n >= 2."""
    nb = 1
    for cand in range(1, n + 1):
        if n % cand != 0:
            continue
        if cand * per_image_bytes > target_bytes:
            break
        if n >= 2 and n // cand < 2:
            break  # keep at least 2 parallel grid steps for megacore (v7x)
        nb = cand
    return nb


def cca_forward(x, w1, b1, w2, b2):
    """x: (N, C, H, W) f32; w1: (Cr, C); b1: (Cr,); w2: (C, Cr); b2: (C,)."""
    N, C, H, W = x.shape
    Cr = w1.shape[0]
    HW = H * W
    HWp = ((HW + 127) // 128) * 128          # padded lane extent (VMEM sizing only)

    # Contiguous NCHW -> (N, C, HW) reshape is free (no HBM copy, no padding).
    x_flat = x.reshape(N, C, HW).astype(jnp.float32)

    # Pre-transpose weights so the kernel does plain (Nb,C)@(C,Cr) / (Nb,Cr)@(Cr,C).
    w1t = jnp.asarray(w1, jnp.float32).T                 # (C, Cr)
    w2t = jnp.asarray(w2, jnp.float32).T                 # (Cr, C)
    b1r = jnp.asarray(b1, jnp.float32).reshape(1, Cr)
    b2r = jnp.asarray(b2, jnp.float32).reshape(1, C)

    per_image_bytes = C * HWp * 4
    Nb = _pick_batch_block(N, per_image_bytes)
    grid = (N // Nb,)

    # Explicit VMEM budget: double-buffered in + out blocks, weights, slack.
    # Cap at 48 MiB so we stay inside v7x's 64 MiB physical VMEM with headroom.
    # TODO(synk): for very large single images (e.g. C*H*W >~ 8 MiB on v7x) a
    # two-phase HW-tiled grid (accumulate stats, then apply gate) would cap VMEM.
    block_bytes = Nb * per_image_bytes
    weight_bytes = (2 * C * Cr + C + Cr) * 4
    needed = 4 * block_bytes + 2 * weight_bytes + (2 << 20)
    vmem_limit = int(min(max(needed, 16 << 20), 48 << 20))

    kernel = functools.partial(cca_kernel, inv_hw=1.0 / float(HW))

    out_flat = pl.pallas_call(
        kernel,
        out_shape=jax.ShapeDtypeStruct((N, C, HW), jnp.float32),
        grid_spec=pltpu.PrefetchScalarGridSpec(
            num_scalar_prefetch=0,
            grid=grid,
            in_specs=[
                pl.BlockSpec((Nb, C, HW), lambda n: (n, 0, 0)),
                pl.BlockSpec((C, Cr), lambda n: (0, 0)),
                pl.BlockSpec((1, Cr), lambda n: (0, 0)),
                pl.BlockSpec((Cr, C), lambda n: (0, 0)),
                pl.BlockSpec((1, C), lambda n: (0, 0)),
            ],
            out_specs=pl.BlockSpec((Nb, C, HW), lambda n: (n, 0, 0)),
        ),
        compiler_params=pltpu.CompilerParams(
            dimension_semantics=("parallel",),
            vmem_limit_bytes=vmem_limit,
        ),
    )(x_flat, w1t, b1r, w2t, b2r)

    return out_flat.reshape(N, C, H, W)


def reference_cca(x, w1, b1, w2, b2):
    """Pure-JAX reference matching the PyTorch semantics."""
    N, C, H, W = x.shape
    mean = jnp.mean(x, axis=(2, 3), keepdims=True)
    var = jnp.mean((x - mean) ** 2, axis=(2, 3), keepdims=True)
    std = jnp.sqrt(var)
    contrast = mean + std                                # (N, C, 1, 1)
    v = contrast.reshape(N, C)
    h = jnp.maximum(v @ w1.T + b1, 0.0)
    y = h @ w2.T + b2
    gate = jax.nn.sigmoid(y).reshape(N, C, 1, 1)
    return x * gate


def _make_case(key, n, c, h, w, cr):
    k_x, k_w1, k_b1, k_w2, k_b2 = jax.random.split(key, 5)
    x = jax.random.normal(k_x, (n, c, h, w), dtype=jnp.float32)
    w1 = jax.random.normal(k_w1, (cr, c), dtype=jnp.float32) * (1.0 / jnp.sqrt(c))
    b1 = jax.random.normal(k_b1, (cr,), dtype=jnp.float32) * 0.1
    w2 = jax.random.normal(k_w2, (c, cr), dtype=jnp.float32) * (1.0 / jnp.sqrt(cr))
    b2 = jax.random.normal(k_b2, (c,), dtype=jnp.float32) * 0.1
    return x, w1, b1, w2, b2


if __name__ == "__main__":
    key = jax.random.PRNGKey(0)
    k1, k2 = jax.random.split(key)

    # Case 1: planes=32, reduction=4, 16x16 spatial (HW lane-aligned: 256).
    x, w1, b1, w2, b2 = _make_case(k1, 2, 32, 16, 16, 8)
    out = cca_forward(x, w1, b1, w2, b2)
    jax.block_until_ready(out)
    ref = reference_cca(x, w1, b1, w2, b2)
    assert out.shape == x.shape
    assert jnp.allclose(out, ref, atol=1e-4, rtol=1e-4), "case 1 mismatch vs reference"

    # Case 2: larger batch (exercises Nb>1 blocking) + non-128-multiple HW
    # (exercises the masked ragged-lane path, no host-side padding).
    x, w1, b1, w2, b2 = _make_case(k2, 8, 32, 10, 10, 8)
    out = cca_forward(x, w1, b1, w2, b2)
    jax.block_until_ready(out)
    ref = reference_cca(x, w1, b1, w2, b2)
    assert out.shape == x.shape
    assert jnp.allclose(out, ref, atol=1e-4, rtol=1e-4), "case 2 mismatch vs reference"

    print("KERNEL_OK")
</pallas_src>

<mosaic_0001>
module attributes {stable_mosaic.version = 11 : i64} {
  func.func @cca_kernel(%arg0: i32, %arg1: memref<1x32x256xf32, #tpu.memory_space<vmem>>, %arg2: memref<32x8xf32, #tpu.memory_space<vmem>>, %arg3: memref<1x8xf32, #tpu.memory_space<vmem>>, %arg4: memref<8x32xf32, #tpu.memory_space<vmem>>, %arg5: memref<1x32xf32, #tpu.memory_space<vmem>>, %arg6: memref<1x32x256xf32, #tpu.memory_space<vmem>>) attributes {dimension_semantics = [#tpu.dimension_semantics<parallel>], iteration_bounds = array<i64: 2>, scalar_prefetch = 0 : i64, scratch_operands = 0 : i64, tpu.core_type = #tpu.core_type<tc>, window_params = [{transform_indices = @transform_0, window_bounds = array<i64: 1, 32, 256>}, {pipeline_mode = #tpu.pipeline_mode<synchronous>, transform_indices = @transform_1, window_bounds = array<i64: 32, 8>}, {pipeline_mode = #tpu.pipeline_mode<synchronous>, transform_indices = @transform_2, window_bounds = array<i64: 1, 8>}, {pipeline_mode = #tpu.pipeline_mode<synchronous>, transform_indices = @transform_3, window_bounds = array<i64: 8, 32>}, {pipeline_mode = #tpu.pipeline_mode<synchronous>, transform_indices = @transform_4, window_bounds = array<i64: 1, 32>}, {transform_indices = @transform_5, window_bounds = array<i64: 1, 32, 256>}]} {
    %c0 = arith.constant 0 : index
    %c0_0 = arith.constant 0 : index
    %c0_1 = arith.constant 0 : index
    %0 = vector.load %arg1[%c0, %c0_0, %c0_1] : memref<1x32x256xf32, #tpu.memory_space<vmem>>, vector<1x32x256xf32>
    %cst = arith.constant dense<0.000000e+00> : vector<1x32xf32>
    %1 = vector.multi_reduction <add>, %0, %cst [2] : vector<1x32x256xf32> to vector<1x32xf32>
    %2 = arith.mulf %0, %0 : vector<1x32x256xf32>
    %cst_2 = arith.constant dense<0.000000e+00> : vector<1x32xf32>
    %3 = vector.multi_reduction <add>, %2, %cst_2 [2] : vector<1x32x256xf32> to vector<1x32xf32>
    %cst_3 = arith.constant 3.906250e-03 : f32
    %4 = vector.broadcast %cst_3 : f32 to vector<1x32xf32>
    %5 = arith.mulf %1, %4 : vector<1x32xf32>
    %cst_4 = arith.constant 3.906250e-03 : f32
    %6 = vector.broadcast %cst_4 : f32 to vector<1x32xf32>
    %7 = arith.mulf %3, %6 : vector<1x32xf32>
    %8 = arith.mulf %5, %5 : vector<1x32xf32>
    %9 = arith.subf %7, %8 : vector<1x32xf32>
    %cst_5 = arith.constant 0.000000e+00 : f32
    %10 = vector.broadcast %cst_5 : f32 to vector<1x32xf32>
    %11 = arith.maximumf %9, %10 : vector<1x32xf32>
    %12 = math.sqrt %11 : vector<1x32xf32>
    %13 = arith.addf %5, %12 : vector<1x32xf32>
    %c0_6 = arith.constant 0 : index
    %c0_7 = arith.constant 0 : index
    %14 = vector.load %arg2[%c0_6, %c0_7] : memref<32x8xf32, #tpu.memory_space<vmem>>, vector<32x8xf32>
    %cst_8 = arith.constant dense<0.000000e+00> : vector<1x8xf32>
    %15 = tpu.matmul %13, %14, %cst_8 {dimension_numbers = #tpu.dot_dimension_numbers<[1], [0], [0], [1], [0, 0, 1, 1], [], []>} : vector<1x32xf32>, vector<32x8xf32>, vector<1x8xf32> -> vector<1x8xf32>
    %c0_9 = arith.constant 0 : index
    %c0_10 = arith.constant 0 : index
    %16 = vector.load %arg3[%c0_9, %c0_10] : memref<1x8xf32, #tpu.memory_space<vmem>>, vector<1x8xf32>
    %17 = arith.addf %15, %16 : vector<1x8xf32>
    %cst_11 = arith.constant 0.000000e+00 : f32
    %18 = vector.broadcast %cst_11 : f32 to vector<1x8xf32>
    %19 = arith.maximumf %17, %18 : vector<1x8xf32>
    %c0_12 = arith.constant 0 : index
    %c0_13 = arith.constant 0 : index
    %20 = vector.load %arg4[%c0_12, %c0_13] : memref<8x32xf32, #tpu.memory_space<vmem>>, vector<8x32xf32>
    %cst_14 = arith.constant dense<0.000000e+00> : vector<1x32xf32>
    %21 = tpu.matmul %19, %20, %cst_14 {dimension_numbers = #tpu.dot_dimension_numbers<[1], [0], [0], [1], [0, 0, 1, 1], [], []>} : vector<1x8xf32>, vector<8x32xf32>, vector<1x32xf32> -> vector<1x32xf32>
    %c0_15 = arith.constant 0 : index
    %c0_16 = arith.constant 0 : index
    %22 = vector.load %arg5[%c0_15, %c0_16] : memref<1x32xf32, #tpu.memory_space<vmem>>, vector<1x32xf32>
    %23 = arith.addf %21, %22 : vector<1x32xf32>
    %24 = arith.negf %23 : vector<1x32xf32>
    %25 = math.exp %24 : vector<1x32xf32>
    %cst_17 = arith.constant 1.000000e+00 : f32
    %26 = vector.broadcast %cst_17 : f32 to vector<1x32xf32>
    %27 = arith.addf %26, %25 : vector<1x32xf32>
    %28 = arith.divf %26, %27 : vector<1x32xf32>
    %29 = vector.shape_cast %28 : vector<1x32xf32> to vector<1x32x1xf32>
    %30 = vector.broadcast %29 : vector<1x32x1xf32> to vector<1x32x256xf32>
    %31 = arith.mulf %0, %30 : vector<1x32x256xf32>
    %c0_18 = arith.constant 0 : index
    %c0_19 = arith.constant 0 : index
    %c0_20 = arith.constant 0 : index
    %32 = vector.load %arg6[%c0_18, %c0_19, %c0_20] : memref<1x32x256xf32, #tpu.memory_space<vmem>>, vector<1x32x256xf32>
    tpu.vector_store %arg6[%c0_18, %c0_19, %c0_20], %31 {strides = array<i32>} : memref<1x32x256xf32, #tpu.memory_space<vmem>>, vector<1x32x256xf32>,
    return
  }
  func.func @transform_0(%arg0: i32) -> (i32, i32, i32) {
    %c0_i32 = arith.constant 0 : i32
    %c0_i32_0 = arith.constant 0 : i32
    %c0_i32_1 = arith.constant 0 : i32
    return %arg0, %c0_i32, %c0_i32_0 : i32, i32, i32
  }
  func.func @transform_1(%arg0: i32) -> (i32, i32) {
    %c0_i32 = arith.constant 0 : i32
    %c0_i32_0 = arith.constant 0 : i32
    %c0_i32_1 = arith.constant 0 : i32
    return %c0_i32, %c0_i32_0 : i32, i32
  }
  func.func @transform_2(%arg0: i32) -> (i32, i32) {
    %c0_i32 = arith.constant 0 : i32
    %c0_i32_0 = arith.constant 0 : i32
    %c0_i32_1 = arith.constant 0 : i32
    return %c0_i32, %c0_i32_0 : i32, i32
  }
  func.func @transform_3(%arg0: i32) -> (i32, i32) {
    %c0_i32 = arith.constant 0 : i32
    %c0_i32_0 = arith.constant 0 : i32
    %c0_i32_1 = arith.constant 0 : i32
    return %c0_i32, %c0_i32_0 : i32, i32
  }
  func.func @transform_4(%arg0: i32) -> (i32, i32) {
    %c0_i32 = arith.constant 0 : i32
    %c0_i32_0 = arith.constant 0 : i32
    %c0_i32_1 = arith.constant 0 : i32
    return %c0_i32, %c0_i32_0 : i32, i32
  }
  func.func @transform_5(%arg0: i32) -> (i32, i32, i32) {
    %c0_i32 = arith.constant 0 : i32
    %c0_i32_0 = arith.constant 0 : i32
    %c0_i32_1 = arith.constant 0 : i32
    return %arg0, %c0_i32, %c0_i32_0 : i32, i32, i32
  }
}

</mosaic_0001>

<llo_original>
// kernel: tpu_custom_call.1
$region0: #{tpu_custom_call.1}
  #allocation0 [shape = 'u32[]', space=smem, size = 0x4, offset = 0x4, fixed_abs, tag = 'smem constant byte address 0x4 - core index']
  #allocation1 [shape = 'u32[144,128]{1,0:T(1,128)}', space=vmem, size = 0x12000, scoped, tag = 'internal scratch']
  %s0 = inlined_call_operand.hbm [shape: f32[2,32,256], index: 0, kind: input, shape index: {}]
  %s1 = inlined_call_operand.vmem [shape: f32[32,8], index: 1, kind: input, shape index: {}]
  %s2 = inlined_call_operand.vmem [shape: f32[1,8], index: 2, kind: input, shape index: {}]
  %s3 = inlined_call_operand.vmem [shape: f32[8,32], index: 3, kind: input, shape index: {}]
  %s4 = inlined_call_operand.vmem [shape: f32[1,32], index: 4, kind: input, shape index: {}]
  %s5 = inlined_call_operand.hbm [shape: f32[2,32,256], index: 5, kind: output, shape index: {}]
  %s6 = sld [smem:[#allocation0]]
  $region57: #{tpu_custom_call.1} parent=0
    _
  %s8 = ssub.s32 1, %s6
  %s9 = scalar_select 0, %s8, %s6
  $region1: #{tpu_custom_call.1} parent=0
    #allocation2 [shape = 'u8[65536]{0}', space=vmem, size = 0x10000, scoped, tag = 'input window, operand 0']
    #allocation3 [shape = 's32[2]{0}', space=sflag, size = 0x8, scoped, tag = 'scoped memory for tpu_custom_call.1']
    #allocation4 [shape = 's32[2]{0}', space=sflag, size = 0x8, scoped, tag = 'scoped memory for tpu_custom_call.1']
    #allocation5 [shape = 'u8[65536]{0}', space=vmem, size = 0x10000, scoped, tag = 'output window, operand 0']
    %10 = vsyncpa [#allocation3], 0
    %s11 = scalar_lea.sflag [#allocation3], 1
    %12 = vsyncpa %s11, 0
    %13 = vsyncpa [#allocation4], 0
    %s14 = scalar_lea.sflag [#allocation4], 1
    %15 = vsyncpa %s14, 0
    loop: start=0, step=1, limit=4
    $region2: #{tpu_custom_call.1} parent=1 // loop_pre_header
      _
    $region3: #{tpu_custom_call.1} parent=1 // loop_header
      %s17 = sphi 0, %s21
      %p18 = scmp.ge.s32.totalorder %s17, 4
      %s27 = sphi 0, %s29
      %s30 = sphi 0, %s27
      %s31 = sphi 0, %s30
      %s47 = sphi 0, %s31
      %s51 = sphi 0, %s51
      %s53 = sphi 0, %s51
      %s54 = sphi 0, %s53
      %s68 = sphi 0, %s54
      %s72 = sphi 0, %s72
      %s74 = sphi 0, %s72
      %s75 = sphi 0, %s74
      %s89 = sphi 0, %s75
      %s93 = sphi 0, %s93
      %s95 = sphi 0, %s93
      %s96 = sphi 0, %s95
      %s110 = sphi 0, %s96
      %s114 = sphi 0, %s114
      %s116 = sphi 0, %s114
      %s117 = sphi 0, %s116
      %s131 = sphi 0, %s117
      %s137 = sphi 0, %s139
      %s140 = sphi 0, %s137
      %s141 = sphi 0, %s140
      %s157 = sphi 0, %s141
    $region4: #{tpu_custom_call.1} parent=1 // loop_header_branch
      %20 = sbr.rel (%p18) target = $region8
    $region5: #{tpu_custom_call.1} parent=1 // loop_body
      %s22 = ssub.s32 %s17, 1
      %s23 = ssub.s32 %s17, 2
      %s24 = sadd.s32 %s17, 1
      %s25 = ssub.s32 %s17, %s24
      %p26 = scmp.eq.s32.totalorder %s25, 0
      %s28 = sadd.s32 %s27, 1
      %s29 = scalar_select %p26, %s27, %s28
      %p32 = pneg %p26
      %p33 = scmp.eq.s32.totalorder %s17, 1
      %p34 = por %p32, %p33
      %p35 = scmp.ne.s32.totalorder %s27, %s30
      %p36 = scmp.eq.s32.totalorder %s17, 0
      %p37 = por %p35, %p36
      %p38 = scmp.ne.s32.totalorder %s27, %s30
      %p39 = scmp.eq.s32.totalorder %s22, 1
      %p40 = por %p38, %p39
      %p41 = scmp.ne.s32.totalorder %s30, %s31
      %p42 = scmp.eq.s32.totalorder %s22, 0
      %p43 = por %p41, %p42
      %p44 = scmp.ne.s32.totalorder %s30, %s31
      %p45 = scmp.eq.s32.totalorder %s23, 1
      %p46 = por %p44, %p45
      %p48 = scmp.ne.s32.totalorder %s31, %s47
      %p49 = scmp.eq.s32.totalorder %s23, 0
      %p50 = por %p48, %p49
      %s52 = sadd.s32 %s51, 1
      %p55 = scmp.eq.s32.totalorder %s17, 1
      %p56 = scmp.ne.s32.totalorder %s51, %s53
      %p57 = scmp.eq.s32.totalorder %s17, 0
      %p58 = por %p56, %p57
      %p59 = scmp.ne.s32.totalorder %s51, %s53
      %p60 = scmp.eq.s32.totalorder %s22, 1
      %p61 = por %p59, %p60
      %p62 = scmp.ne.s32.totalorder %s53, %s54
      %p63 = scmp.eq.s32.totalorder %s22, 0
      %p64 = por %p62, %p63
      %p65 = scmp.ne.s32.totalorder %s53, %s54
      %p66 = scmp.eq.s32.totalorder %s23, 1
      %p67 = por %p65, %p66
      %p69 = scmp.ne.s32.totalorder %s54, %s68
      %p70 = scmp.eq.s32.totalorder %s23, 0
      %p71 = por %p69, %p70
      %s73 = sadd.s32 %s72, 1
      %p76 = scmp.eq.s32.totalorder %s17, 1
      %p77 = scmp.ne.s32.totalorder %s72, %s74
      %p78 = scmp.eq.s32.totalorder %s17, 0
      %p79 = por %p77, %p78
      %p80 = scmp.ne.s32.totalorder %s72, %s74
      %p81 = scmp.eq.s32.totalorder %s22, 1
      %p82 = por %p80, %p81
      %p83 = scmp.ne.s32.totalorder %s74, %s75
      %p84 = scmp.eq.s32.totalorder %s22, 0
      %p85 = por %p83, %p84
      %p86 = scmp.ne.s32.totalorder %s74, %s75
      %p87 = scmp.eq.s32.totalorder %s23, 1
      %p88 = por %p86, %p87
      %p90 = scmp.ne.s32.totalorder %s75, %s89
      %p91 = scmp.eq.s32.totalorder %s23, 0
      %p92 = por %p90, %p91
      %s94 = sadd.s32 %s93, 1
      %p97 = scmp.eq.s32.totalorder %s17, 1
      %p98 = scmp.ne.s32.totalorder %s93, %s95
      %p99 = scmp.eq.s32.totalorder %s17, 0
      %p100 = por %p98, %p99
      %p101 = scmp.ne.s32.totalorder %s93, %s95
      %p102 = scmp.eq.s32.totalorder %s22, 1
      %p103 = por %p101, %p102
      %p104 = scmp.ne.s32.totalorder %s95, %s96
      %p105 = scmp.eq.s32.totalorder %s22, 0
      %p106 = por %p104, %p105
      %p107 = scmp.ne.s32.totalorder %s95, %s96
      %p108 = scmp.eq.s32.totalorder %s23, 1
      %p109 = por %p107, %p108
      %p111 = scmp.ne.s32.totalorder %s96, %s110
      %p112 = scmp.eq.s32.totalorder %s23, 0
      %p113 = por %p111, %p112
      %s115 = sadd.s32 %s114, 1
      %p118 = scmp.eq.s32.totalorder %s17, 1
      %p119 = scmp.ne.s32.totalorder %s114, %s116
      %p120 = scmp.eq.s32.totalorder %s17, 0
      %p121 = por %p119, %p120
      %p122 = scmp.ne.s32.totalorder %s114, %s116
      %p123 = scmp.eq.s32.totalorder %s22, 1
      %p124 = por %p122, %p123
      %p125 = scmp.ne.s32.totalorder %s116, %s117
      %p126 = scmp.eq.s32.totalorder %s22, 0
      %p127 = por %p125, %p126
      %p128 = scmp.ne.s32.totalorder %s116, %s117
      %p129 = scmp.eq.s32.totalorder %s23, 1
      %p130 = por %p128, %p129
      %p132 = scmp.ne.s32.totalorder %s117, %s131
      %p133 = scmp.eq.s32.totalorder %s23, 0
      %p134 = por %p132, %p133
      %s135 = ssub.s32 %s17, %s24
      %p136 = scmp.eq.s32.totalorder %s135, 0
      %s138 = sadd.s32 %s137, 1
      %s139 = scalar_select %p136, %s137, %s138
      %p142 = pneg %p136
      %p143 = scmp.eq.s32.totalorder %s17, 1
      %p144 = por %p142, %p143
      %p145 = scmp.ne.s32.totalorder %s137, %s140
      %p146 = scmp.eq.s32.totalorder %s17, 0
      %p147 = por %p145, %p146
      %p148 = scmp.ne.s32.totalorder %s137, %s140
      %p149 = scmp.eq.s32.totalorder %s22, 1
      %p150 = por %p148, %p149
      %p151 = scmp.ne.s32.totalorder %s140, %s141
      %p152 = scmp.eq.s32.totalorder %s22, 0
      %p153 = por %p151, %p152
      %p154 = scmp.ne.s32.totalorder %s140, %s141
      %p155 = scmp.eq.s32.totalorder %s23, 1
      %p156 = por %p154, %p155
      %p158 = scmp.ne.s32.totalorder %s141, %s157
      %p159 = scmp.eq.s32.totalorder %s23, 0
      %p160 = por %p158, %p159
      %p161 = scmp.le.s32.totalorder 1, %s17
      %p162 = scmp.lt.s32.totalorder %s17, 3
      %p163 = pnand %p161, %p162
      %p164 = pneg %p163
      // Predicated region
      $region9: #{tpu_custom_call.1} parent=5 // pred_check
        _
      $region10: #{tpu_custom_call.1} parent=5 // pred_check_branch
        %166 = sbr.rel (%p163) target = $region12
      $region11: #{tpu_custom_call.1} parent=5 // pred_region
        %s167 = ssub.s32 %s17, 1
        // Predicated region
        $region13: #{tpu_custom_call.1} parent=11 // pred_check
          %p168 = pneg %p64
        $region14: #{tpu_custom_call.1} parent=11 // pred_check_branch
          %170 = sbr.rel (%p168) target = $region16
        $region15: #{tpu_custom_call.1} parent=11 // pred_region
          _
        $region16: #{tpu_custom_call.1} parent=11 // pred_fallthru
          _
        // Predicated region
        $region17: #{tpu_custom_call.1} parent=11 // pred_check
          %p171 = pneg %p85
        $region18: #{tpu_custom_call.1} parent=11 // pred_check_branch
          %173 = sbr.rel (%p171) target = $region20
        $region19: #{tpu_custom_call.1} parent=11 // pred_region
          _
        $region20: #{tpu_custom_call.1} parent=11 // pred_fallthru
          _
        // Predicated region
        $region21: #{tpu_custom_call.1} parent=11 // pred_check
          %p174 = pneg %p106
        $region22: #{tpu_custom_call.1} parent=11 // pred_check_branch
          %176 = sbr.rel (%p174) target = $region24
        $region23: #{tpu_custom_call.1} parent=11 // pred_region
          _
        $region24: #{tpu_custom_call.1} parent=11 // pred_fallthru
          _
        // Predicated region
        $region25: #{tpu_custom_call.1} parent=11 // pred_check
          %p177 = pneg %p127
        $region26: #{tpu_custom_call.1} parent=11 // pred_check_branch
          %179 = sbr.rel (%p177) target = $region28
        $region27: #{tpu_custom_call.1} parent=11 // pred_region
          _
        $region28: #{tpu_custom_call.1} parent=11 // pred_fallthru
          _
      $region12: #{tpu_custom_call.1} parent=5 // pred_fallthru
        _
      %p180 = scmp.lt.s32.totalorder %s17, 2
      // Predicated region
      $region29: #{tpu_custom_call.1} parent=5 // pred_check
        %p181 = pneg %p180
      $region30: #{tpu_custom_call.1} parent=5 // pred_check_branch
        %183 = sbr.rel (%p181) target = $region32
      $region31: #{tpu_custom_call.1} parent=5 // pred_region
        // Predicated region
        $region33: #{tpu_custom_call.1} parent=31 // pred_check
          %p184 = pneg %p37
        $region34: #{tpu_custom_call.1} parent=31 // pred_check_branch
          %186 = sbr.rel (%p184) target = $region36
        $region35: #{tpu_custom_call.1} parent=31 // pred_region
          %s187 = sand.u32 %s27, 1
          %s188 = scalar_lea.sflag [#allocation3], %s187
          %s189 = sand.u32 %s27, 1
          %s190 = smul.addr %s189, 64
          %s191 = scalar_lea.vmem [#allocation2], %s190
          %s193 = ssub.s32 1024, 1024
          %194 = vsyncadd %s188, %s193
          %s195 = smul.addr %s17, 8
          %s196 = smul.addr %s195, 128
          %s197 = scalar_lea.hbm %s0, %s196
          %s198 = sshll.u32 %s191, 4
          %s199 = int_to_ptr.vmem [resolvable:$true] %s198
          %204 = dma.hbm_to_vmem [thread:$0]  %s197, 1024, %s199, %s188, 256, 256, 16
        $region36: #{tpu_custom_call.1} parent=31 // pred_fallthru
          _
      $region32: #{tpu_custom_call.1} parent=5 // pred_fallthru
        _
      %p205 = scmp.le.s32.totalorder 1, %s17
      %p206 = scmp.lt.s32.totalorder %s17, 3
      %p207 = pnand %p205, %p206
      %p208 = pneg %p207
      // Predicated region
      $region37: #{tpu_custom_call.1} parent=5 // pred_check
        _
      $region38: #{tpu_custom_call.1} parent=5 // pred_check_branch
        %210 = sbr.rel (%p207) target = $region40
      $region39: #{tpu_custom_call.1} parent=5 // pred_region
        %s211 = ssub.s32 %s17, 1
        %s212 = sand.u32 %s30, 1
        %s213 = scalar_lea.sflag [#allocation3], %s212
        %s214 = sand.u32 %s30, 1
        %s215 = smul.addr %s214, 64
        %s216 = scalar_lea.vmem [#allocation2], %s215
        // Predicated region
        $region41: #{tpu_custom_call.1} parent=39 // pred_check
          %p217 = pneg %p43
        $region42: #{tpu_custom_call.1} parent=39 // pred_check_branch
          %219 = sbr.rel (%p217) target = $region44
        $region43: #{tpu_custom_call.1} parent=39 // pred_region
          %220 = dma.done %s213, 1024
        $region44: #{tpu_custom_call.1} parent=39 // pred_fallthru
          _
        %s221 = sand.u32 %s30, 1
        %s222 = scalar_lea.sflag [#allocation3], %s221
        %s223 = sand.u32 %s30, 1
        %s224 = smul.addr %s223, 64
        %s225 = scalar_lea.vmem [#allocation2], %s224
        %p226 = pneg %p43
        %p227 = pneg %p40
        %p228 = pneg %p64
        %p229 = pneg %p61
        %p230 = pneg %p85
        %p231 = pneg %p82
        %p232 = pneg %p106
        %p233 = pneg %p103
        %p234 = pneg %p127
        %p235 = pneg %p124
        %p236 = pneg %p153
        %p237 = pneg %p150
        %s238 = sand.u32 %s140, 1
        %s239 = scalar_lea.sflag [#allocation4], %s238
        %s240 = sand.u32 %s140, 1
        %s241 = smul.addr %s240, 64
        %s242 = scalar_lea.vmem [#allocation5], %s241
        %v243 = vld [vmem:[%s216] sm:$0xff]
        %v244 = vld [vmem:[%s216 + $0x8] sm:$0xff]
        %v245 = vld [vmem:[%s216 + $0x10] sm:$0xff]
        %v246 = vld [vmem:[%s216 + $0x18] sm:$0xff]
        %v247 = vld [vmem:[%s216 + $0x20] sm:$0xff]
        %v248 = vld [vmem:[%s216 + $0x28] sm:$0xff]
        %v249 = vld [vmem:[%s216 + $0x30] sm:$0xff]
        %v250 = vld [vmem:[%s216 + $0x38] sm:$0xff]
        %v251 = vadd.f32 %v243, %v244
        %252 = vadd.xlane.f32.xlu0 %v251
        %v253 = vpop.xlane.xlu0 %252
        %v254 = vadd.f32 %v245, %v246
        %255 = vadd.xlane.f32.xlu0 %v254
        %v256 = vpop.xlane.xlu0 %255
        %v257 = vadd.f32 %v247, %v248
        %258 = vadd.xlane.f32.xlu0 %v257
        %v259 = vpop.xlane.xlu0 %258
        %v260 = vadd.f32 %v249, %v250
        %261 = vadd.xlane.f32.xlu0 %v260
        %v262 = vpop.xlane.xlu0 %261
        %v263 = vmul.f32 %v243, %v243
        %v264 = vmul.f32 %v244, %v244
        %v265 = vmul.f32 %v245, %v245
        %v266 = vmul.f32 %v246, %v246
        %v267 = vmul.f32 %v247, %v247
        %v268 = vmul.f32 %v248, %v248
        %v269 = vmul.f32 %v249, %v249
        %v270 = vmul.f32 %v250, %v250
        %v271 = vadd.f32 %v263, %v264
        %272 = vadd.xlane.f32.xlu0 %v271
        %v273 = vpop.xlane.xlu0 %272
        %v274 = vadd.f32 %v265, %v266
        %275 = vadd.xlane.f32.xlu0 %v274
        %v276 = vpop.xlane.xlu0 %275
        %v277 = vadd.f32 %v267, %v268
        %278 = vadd.xlane.f32.xlu0 %v277
        %v279 = vpop.xlane.xlu0 %278
        %v280 = vadd.f32 %v269, %v270
        %281 = vadd.xlane.f32.xlu0 %v280
        %v282 = vpop.xlane.xlu0 %281
        %v283 = vmul.f32 %v253, 0.00390625
        %v284 = vmul.f32 %v256, 0.00390625
        %v285 = vmul.f32 %v259, 0.00390625
        %v286 = vmul.f32 %v262, 0.00390625
        %v287 = vmul.f32 %v273, 0.00390625
        %v288 = vmul.f32 %v276, 0.00390625
        %v289 = vmul.f32 %v279, 0.00390625
        %v290 = vmul.f32 %v282, 0.00390625
        %v291 = vmul.f32 %v283, %v283
        %v292 = vmul.f32 %v284, %v284
        %v293 = vmul.f32 %v285, %v285
        %v294 = vmul.f32 %v286, %v286
        %v295 = vsub.f32 %v287, %v291
        %v296 = vsub.f32 %v288, %v292
        %v297 = vsub.f32 %v289, %v293
        %v298 = vsub.f32 %v290, %v294
        %v299 = vmax.f32 %v295, 0.0
        %v300 = vmax.f32 %v296, 0.0
        %v301 = vmax.f32 %v297, 0.0
        %v302 = vmax.f32 %v298, 0.0
        %v303 = vrsqrt.pop %v299
        %v304 = vmul.f32 %v299, %v303
        %vm305 = vcmp.eq.f32.partialorder %v299, inf
        %v306 = vsel %vm305, %v299, %v304
        %vm307 = vcmp.eq.f32.partialorder %v299, 0.0
        %v308 = vand.u32 %v299, 2147483648
        %v309 = vsel %vm307, %v308, %v306
        %v310 = vrsqrt.pop %v300
        %v311 = vmul.f32 %v300, %v310
        %vm312 = vcmp.eq.f32.partialorder %v300, inf
        %v313 = vsel %vm312, %v300, %v311
        %vm314 = vcmp.eq.f32.partialorder %v300, 0.0
        %v315 = vand.u32 %v300, 2147483648
        %v316 = vsel %vm314, %v315, %v313
        %v317 = vrsqrt.pop %v301
        %v318 = vmul.f32 %v301, %v317
        %vm319 = vcmp.eq.f32.partialorder %v301, inf
        %v320 = vsel %vm319, %v301, %v318
        %vm321 = vcmp.eq.f32.partialorder %v301, 0.0
        %v322 = vand.u32 %v301, 2147483648
        %v323 = vsel %vm321, %v322, %v320
        %v324 = vrsqrt.pop %v302
        %v325 = vmul.f32 %v302, %v324
        %vm326 = vcmp.eq.f32.partialorder %v302, inf
        %v327 = vsel %vm326, %v302, %v325
        %vm328 = vcmp.eq.f32.partialorder %v302, 0.0
        %v329 = vand.u32 %v302, 2147483648
        %v330 = vsel %vm328, %v329, %v327
        %v331 = vadd.f32 %v283, %v309
        %v332 = vadd.f32 %v284, %v316
        %v333 = vadd.f32 %v285, %v323
        %v334 = vadd.f32 %v286, %v330
        %v335 = vld [vmem:[%s1] sm:$0xff]
        %v336 = vld [vmem:[%s1 + $0x8] sm:$0xff]
        %v337 = vld [vmem:[%s1 + $0x10] sm:$0xff]
        %v338 = vld [vmem:[%s1 + $0x18] sm:$0xff]
        %v339 = vld [vmem:[%s2] sm:$0x1]
        %v344 = vlaneseq
        %v345 = vand.u32 %v344, 127
        %v346 = vlaneseq
        %v347 = vshrl.u32 %v346, 7
        %v348 = vsub.s32 %v345, %v347
        %v349 = vrot.slane %v331, %v348
        %v350 = vadd.s32 %v345, 4294967288
        %v351 = vlaneseq
        %v352 = vshrl.u32 %v351, 7
        %v353 = vsub.s32 %v350, %v352
        %v354 = vrot.slane %v332, %v353
        %vm355 = vcmask 130112
        %v356 = vsel %vm355, %v354, %v349
        %v357 = vadd.s32 %v345, 4294967280
        %v358 = vlaneseq
        %v359 = vshrl.u32 %v358, 7
        %v360 = vsub.s32 %v357, %v359
        %v361 = vrot.slane %v333, %v360
        %vm362 = vcmask 195712
        %v363 = vsel %vm362, %v361, %v356
        %v364 = vadd.s32 %v345, 4294967272
        %v365 = vlaneseq
        %v366 = vshrl.u32 %v365, 7
        %v367 = vsub.s32 %v364, %v366
        %v368 = vrot.slane %v334, %v367
        %vm369 = vcmask 261312
        %v370 = vsel %vm369, %v368, %v363
        %vm371 = vcmask 261120
        %v372 = vsel %vm371, %v370, 0
        %374 = vmatprep.subr.mxu0 0.0
        %375 = vmatpush1.msra.mxu0 %v335
        %376 = vmatprep.subr.mxu0 0.0
        %377 = vmatpush1.msra.mxu0 %v336
        %378 = vmatprep.subr.mxu0 0.0
        %379 = vmatpush1.msra.mxu0 %v337
        %380 = vmatprep.subr.mxu0 0.0
        %381 = vmatpush1.msra.mxu0 %v338
        %382 = vmatprep.subr.mxu0 0.0
        %383 = vmatpush1.msra.mxu0 0.0
        %384 = vmatprep.subr.mxu0 0.0
        %385 = vmatpush1.msra.mxu0 0.0
        %386 = vmatprep.subr.mxu0 0.0
        %387 = vmatpush1.msra.mxu0 0.0
        %388 = vmatprep.subr.mxu0 0.0
        %389 = vmatpush1.msra.mxu0 0.0
        %390 = vmatprep.subr.mxu0 0.0
        %391 = vmatpush1.msra.mxu0 0.0
        %392 = vmatprep.subr.mxu0 0.0
        %393 = vmatpush1.msra.mxu0 0.0
        %394 = vmatprep.subr.mxu0 0.0
        %395 = vmatpush1.msra.mxu0 0.0
        %396 = vmatprep.subr.mxu0 0.0
        %397 = vmatpush1.msra.mxu0 0.0
        %398 = vmatprep.subr.mxu0 0.0
        %399 = vmatpush1.msra.mxu0 0.0
        %400 = vmatprep.subr.mxu0 0.0
        %401 = vmatpush1.msra.mxu0 0.0
        %402 = vmatprep.subr.mxu0 0.0
        %403 = vmatpush1.msra.mxu0 0.0
        %404 = vmatprep.subr.mxu0 0.0
        %405 = vmatpush1.msra.mxu0 0.0
        %406 = vmatprep.subr.mxu0 0.0
        %407 = vmatpush1.msra.mxu0 0.0
        %408 = vmatprep.subr.mxu0 0.0
        %409 = vmatpush1.msra.mxu0 0.0
        %410 = vmatprep.subr.mxu0 0.0
        %411 = vmatpush1.msra.mxu0 0.0
        %412 = vmatprep.subr.mxu0 0.0
        %413 = vmatpush1.msra.mxu0 0.0
        %414 = vmatprep.subr.mxu0 0.0
        %415 = vmatpush1.msra.mxu0 0.0
        %416 = vmatprep.subr.mxu0 0.0
        %417 = vmatpush1.msra.mxu0 0.0
        %418 = vmatprep.subr.mxu0 0.0
        %419 = vmatpush1.msra.mxu0 0.0
        %420 = vmatprep.subr.mxu0 0.0
        %421 = vmatpush1.msra.mxu0 0.0
        %422 = vmatprep.subr.mxu0 0.0
        %423 = vmatpush1.msra.mxu0 0.0
        %424 = vmatprep.subr.mxu0 0.0
        %425 = vmatpush1.msra.mxu0 0.0
        %426 = vmatprep.subr.mxu0 0.0
        %427 = vmatpush1.msra.mxu0 0.0
        %428 = vmatprep.subr.mxu0 0.0
        %429 = vmatpush1.msra.mxu0 0.0
        %430 = vmatprep.subr.mxu0 0.0
        %431 = vmatpush1.msra.mxu0 0.0
        %432 = vmatprep.subr.mxu0 0.0
        %433 = vmatpush1.msra.mxu0 0.0
        %434 = vmatprep.subr.mxu0 0.0
        %435 = vmatpush1.msra.mxu0 0.0
        %436 = vmatprep.subr.mxu0 0.0
        %437 = vmatpush1.msra.mxu0 0.0
        %438 = vmatprep.mubr.f32.mxu0 0.0
        %439 = vmatmul.mubr.f32.gmra.mrb[0].mxu0 %v372
        %v440 = vpop.f32.mrb[0].mxu0
        %v441 = vadd.f32 %v339, %v440
        %v442 = vpop.f32.mrb[0].mxu0
        %443 = vdwg.mxu0
        %v444 = vmax.f32 %v441, 0.0
        %v445 = vld [vmem:[%s3] sm:$0xff]
        %v446 = vld [vmem:[%s4] sm:$0x1]
        %vm447 = vcmask 64512
        %v449 = vsel %vm447, %v444, 0
        %451 = vmatprep.subr.mxu0 0.0
        %452 = vmatpush1.msra.mxu0 %v445
        %453 = vmatprep.subr.mxu0 0.0
        %454 = vmatpush1.msra.mxu0 0.0
        %455 = vmatprep.subr.mxu0 0.0
        %456 = vmatpush1.msra.mxu0 0.0
        %457 = vmatprep.subr.mxu0 0.0
        %458 = vmatpush1.msra.mxu0 0.0
        %459 = vmatprep.subr.mxu0 0.0
        %460 = vmatpush1.msra.mxu0 0.0
        %461 = vmatprep.subr.mxu0 0.0
        %462 = vmatpush1.msra.mxu0 0.0
        %463 = vmatprep.subr.mxu0 0.0
        %464 = vmatpush1.msra.mxu0 0.0
        %465 = vmatprep.subr.mxu0 0.0
        %466 = vmatpush1.msra.mxu0 0.0
        %467 = vmatprep.subr.mxu0 0.0
        %468 = vmatpush1.msra.mxu0 0.0
        %469 = vmatprep.subr.mxu0 0.0
        %470 = vmatpush1.msra.mxu0 0.0
        %471 = vmatprep.subr.mxu0 0.0
        %472 = vmatpush1.msra.mxu0 0.0
        %473 = vmatprep.subr.mxu0 0.0
        %474 = vmatpush1.msra.mxu0 0.0
        %475 = vmatprep.subr.mxu0 0.0
        %476 = vmatpush1.msra.mxu0 0.0
        %477 = vmatprep.subr.mxu0 0.0
        %478 = vmatpush1.msra.mxu0 0.0
        %479 = vmatprep.subr.mxu0 0.0
        %480 = vmatpush1.msra.mxu0 0.0
        %481 = vmatprep.subr.mxu0 0.0
        %482 = vmatpush1.msra.mxu0 0.0
        %483 = vmatprep.subr.mxu0 0.0
        %484 = vmatpush1.msra.mxu0 0.0
        %485 = vmatprep.subr.mxu0 0.0
        %486 = vmatpush1.msra.mxu0 0.0
        %487 = vmatprep.subr.mxu0 0.0
        %488 = vmatpush1.msra.mxu0 0.0
        %489 = vmatprep.subr.mxu0 0.0
        %490 = vmatpush1.msra.mxu0 0.0
        %491 = vmatprep.subr.mxu0 0.0
        %492 = vmatpush1.msra.mxu0 0.0
        %493 = vmatprep.subr.mxu0 0.0
        %494 = vmatpush1.msra.mxu0 0.0
        %495 = vmatprep.subr.mxu0 0.0
        %496 = vmatpush1.msra.mxu0 0.0
        %497 = vmatprep.subr.mxu0 0.0
        %498 = vmatpush1.msra.mxu0 0.0
        %499 = vmatprep.subr.mxu0 0.0
        %500 = vmatpush1.msra.mxu0 0.0
        %501 = vmatprep.subr.mxu0 0.0
        %502 = vmatpush1.msra.mxu0 0.0
        %503 = vmatprep.subr.mxu0 0.0
        %504 = vmatpush1.msra.mxu0 0.0
        %505 = vmatprep.subr.mxu0 0.0
        %506 = vmatpush1.msra.mxu0 0.0
        %507 = vmatprep.subr.mxu0 0.0
        %508 = vmatpush1.msra.mxu0 0.0
        %509 = vmatprep.subr.mxu0 0.0
        %510 = vmatpush1.msra.mxu0 0.0
        %511 = vmatprep.subr.mxu0 0.0
        %512 = vmatpush1.msra.mxu0 0.0
        %513 = vmatprep.subr.mxu0 0.0
        %514 = vmatpush1.msra.mxu0 0.0
        %515 = vmatprep.mubr.f32.mxu0 0.0
        %516 = vmatmul.mubr.f32.gmra.mrb[0].mxu0 %v449
        %v517 = vpop.f32.mrb[0].mxu0
        %v518 = vadd.f32 %v446, %v517
        %v519 = vpop.f32.mrb[0].mxu0
        %520 = vdwg.mxu0
        %v521 = vxor.u32 %v518, 2147483648
        %v522 = vmul.f32 %v521, 1.442695
        %v523 = vpow.pop %v522
        %v524 = vadd.f32 %v523, 1.0
        %v525 = vrcp.pop %v524
        %v526 = vmul.f32 1.0, %v525
        %v527 = vlaneseq
        %v528 = vshrl.u32 %v527, 7
        %v529 = vsub.s32 0, %v528
        %v530 = vrot.slane %v526, %v529
        %532 = vbcast.lane.b32.xlu0 %v530, 256
        %v533 = vpop.permute.xlu0 %532
        %s535 = sor.u32 256, 8
        %536 = vbcast.lane.b32.xlu0 %v530, %s535
        %v537 = vpop.permute.xlu0 %536
        %s539 = sor.u32 256, 16
        %540 = vbcast.lane.b32.xlu0 %v530, %s539
        %v541 = vpop.permute.xlu0 %540
        %s543 = sor.u32 256, 24
        %544 = vbcast.lane.b32.xlu0 %v530, %s543
        %v545 = vpop.permute.xlu0 %544
        %v546 = vmul.f32 %v243, %v533
        %v547 = vmul.f32 %v244, %v533
        %v548 = vmul.f32 %v245, %v537
        %v549 = vmul.f32 %v246, %v537
        %v550 = vmul.f32 %v247, %v541
        %v551 = vmul.f32 %v248, %v541
        %v552 = vmul.f32 %v249, %v545
        %v553 = vmul.f32 %v250, %v545
        %554 = vst [vmem:[%s242] sm:$0xff] %v546
        %555 = vst [vmem:[%s242 + $0x8] sm:$0xff] %v547
        %556 = vst [vmem:[%s242 + $0x10] sm:$0xff] %v548
        %557 = vst [vmem:[%s242 + $0x18] sm:$0xff] %v549
        %558 = vst [vmem:[%s242 + $0x20] sm:$0xff] %v550
        %559 = vst [vmem:[%s242 + $0x28] sm:$0xff] %v551
        %560 = vst [vmem:[%s242 + $0x30] sm:$0xff] %v552
        %561 = vst [vmem:[%s242 + $0x38] sm:$0xff] %v553
        %s562 = sand.u32 %s140, 1
        %s563 = scalar_lea.sflag [#allocation4], %s562
        %s564 = sand.u32 %s140, 1
        %s565 = smul.addr %s564, 64
        %s566 = scalar_lea.vmem [#allocation5], %s565
        // Predicated region
        $region45: #{tpu_custom_call.1} parent=39 // pred_check
          %p567 = pneg %p150
        $region46: #{tpu_custom_call.1} parent=39 // pred_check_branch
          %569 = sbr.rel (%p567) target = $region48
        $region47: #{tpu_custom_call.1} parent=39 // pred_region
          %s571 = ssub.s32 1024, 1024
          %572 = vsyncadd %s563, %s571
          %s573 = smul.addr %s22, 8
          %s574 = smul.addr %s573, 128
          %s575 = scalar_lea.hbm %s5, %s574
          %s576 = sshll.u32 %s566, 4
          %s577 = int_to_ptr.vmem [resolvable:$true] %s576
          %582 = dma.vmem_to_hbm [thread:$0]  %s577, 1024, %s575, %s563, 256, 256, 16
        $region48: #{tpu_custom_call.1} parent=39 // pred_fallthru
          _
      $region40: #{tpu_custom_call.1} parent=5 // pred_fallthru
        _
      %p583 = scmp.le.s32.totalorder 2, %s17
      // Predicated region
      $region49: #{tpu_custom_call.1} parent=5 // pred_check
        %p584 = pneg %p583
      $region50: #{tpu_custom_call.1} parent=5 // pred_check_branch
        %586 = sbr.rel (%p584) target = $region52
      $region51: #{tpu_custom_call.1} parent=5 // pred_region
        %s587 = ssub.s32 %s17, 2
        // Predicated region
        $region53: #{tpu_custom_call.1} parent=51 // pred_check
          %p588 = pneg %p156
        $region54: #{tpu_custom_call.1} parent=51 // pred_check_branch
          %590 = sbr.rel (%p588) target = $region56
        $region55: #{tpu_custom_call.1} parent=51 // pred_region
          %s591 = sand.u32 %s141, 1
          %s592 = scalar_lea.sflag [#allocation4], %s591
          %s593 = sand.u32 %s141, 1
          %s594 = smul.addr %s593, 64
          %s595 = scalar_lea.vmem [#allocation5], %s594
          %596 = dma.done %s592, 1024
        $region56: #{tpu_custom_call.1} parent=51 // pred_fallthru
          _
      $region52: #{tpu_custom_call.1} parent=5 // pred_fallthru
        _
    $region6: #{tpu_custom_call.1} parent=1 // loop_footer
      %s21 = sadd.s32 1, %s17
    $region7: #{tpu_custom_call.1} parent=1 // loop_footer_branch
      %16 = sbr.rel target = $region3
    $region8: #{tpu_custom_call.1} parent=1 // loop_exit
      _
    %597 = vsyncpa [#allocation3], 1
    %s598 = scalar_lea.sflag [#allocation3], 1
    %599 = vsyncpa %s598, 1
    %600 = vsyncpa [#allocation4], 1
    %s601 = scalar_lea.sflag [#allocation4], 1
    %602 = vsyncpa %s601, 1

</llo_original>
